<compile_context>
chip_gen: v6e
topology: v6e:2x2x1
jax: 0.10.0
libtpu: 0.0.40
codegen_flags: <defaults>
</compile_context>

<pallas_src>
import functools

import jax
import jax.numpy as jnp
import numpy as np
from jax import lax
from jax.experimental import pallas as pl
from jax.experimental.pallas import tpu as pltpu


def _spatial_gate_kernel(b_ref, wm_ref, x_ref, o_ref, *, W):
    """One block of Nb images per grid step.

    b_ref:  SMEM (1,)     folded conv/BN bias
    wm_ref: VMEM (18, L)  weight-folded boundary masks:
                          row t      = w_max[t]  * valid_t   (t = ki*3+kj)
                          row 9 + t  = w_mean[t] * valid_t
    x_ref:  VMEM (Nb, C, L)  with L = H*W (lane-dense)
    o_ref:  VMEM (Nb, C, L)
    """
    x = x_ref[...]                                   # (Nb, C, L), native dtype
    Nb, C, L = x.shape

    # ChannelPool: max and mean over the channel (sublane) axis.
    # Mean accumulates in f32 regardless of input dtype.
    p_max = jnp.max(x, axis=1).astype(jnp.float32)                       # (Nb, L)
    p_mean = jnp.sum(x, axis=1, dtype=jnp.float32) * (1.0 / C)           # (Nb, L)

    wm = wm_ref[...]                                 # (18, L) f32, loaded once

    # Center tap (di = dj = 0): no roll; its boundary mask is all-ones so the
    # folded weighted mask is just the weight.
    acc = wm[4:5] * p_max + wm[13:14] * p_mean                           # (Nb, L)

    # Remaining 8 taps: one flat roll per pooled plane per tap, boundary
    # handled by the pre-folded weighted mask (equivalent to zero padding).
    for ki in range(3):
        for kj in range(3):
            if ki == 1 and kj == 1:
                continue
            t = ki * 3 + kj
            d = (ki - 1) * W + (kj - 1)
            shift = (-d) % L
            sm = pltpu.roll(p_max, shift, axis=1)                        # (Nb, L)
            sn = pltpu.roll(p_mean, shift, axis=1)                       # (Nb, L)
            acc = acc + wm[t:t + 1] * sm + wm[9 + t:10 + t] * sn

    scale = jax.nn.sigmoid(acc + b_ref[0])[:, None, :]                   # (Nb, 1, L) f32

    # Apply the gate in f32; cast only at the store.
    o_ref[...] = (x.astype(jnp.float32) * scale).astype(o_ref.dtype)


def spatial_gate(x, conv_w, bn_gamma, bn_beta, bn_mean, bn_var, eps=1e-5):
    """x: (N, C, H, W).  conv_w: (1, 2, 3, 3).  BN params: (1,)."""
    N, C, H, W = x.shape
    L = H * W

    # Fold eval-mode BatchNorm (single output channel) into the conv.
    inv_std = bn_gamma[0] / jnp.sqrt(bn_var[0] + eps)                    # scalar
    w_f = (conv_w[0].astype(jnp.float32) * inv_std).reshape(2, 9)        # (plane, tap)
    b_f = (bn_beta[0] - bn_mean[0] * inv_std).reshape(1).astype(jnp.float32)

    # Zero-padding validity masks for all 9 taps on the flattened H*W axis
    # (host numpy, compile-time constants). Center tap mask is all ones.
    p = np.arange(L)
    ri, ci = p // W, p % W
    valid = np.empty((9, L), np.float32)
    for ki in range(3):
        for kj in range(3):
            di, dj = ki - 1, kj - 1
            valid[ki * 3 + kj] = ((ri + di >= 0) & (ri + di < H) &
                                  (ci + dj >= 0) & (ci + dj < W)).astype(np.float32)
    valid = jnp.asarray(valid)                                           # (9, L)

    # Fold the conv weights into the boundary masks: one weighted mask per
    # (plane, tap). Rows 0-8: max plane, rows 9-17: mean plane.
    wm = (w_f[:, :, None] * valid[None, :, :]).reshape(18, L)            # (18, L) f32

    # Lane-dense layout and batched blocks.
    x_flat = x.reshape(N, C, L)
    per_image = C * L * x_flat.dtype.itemsize
    target_block = 2 << 20                                # ~2 MiB per block
    nb_cap = max(1, target_block // per_image)
    if N >= 2:
        # Keep grid length >= 2 so both v7x TensorCores get work.
        nb_cap = min(nb_cap, max(1, N // 2))
    Nb = max(d for d in range(1, min(nb_cap, N) + 1) if N % d == 0)
    grid_n = N // Nb

    # Explicit VMEM budget: double-buffered in + out blocks, double-buffered
    # masks, plus slack for f32 intermediates. Capped to stay under v7x's
    # 64 MiB physical VMEM with headroom.
    block_bytes = Nb * per_image
    mask_bytes = 18 * L * 4
    vmem_limit = int(min(40 << 20,
                         max(16 << 20,
                             6 * block_bytes + 2 * mask_bytes + (2 << 20))))

    kernel = functools.partial(_spatial_gate_kernel, W=W)
    out = pl.pallas_call(
        kernel,
        out_shape=jax.ShapeDtypeStruct((N, C, L), x.dtype),
        grid_spec=pltpu.PrefetchScalarGridSpec(
            num_scalar_prefetch=0,
            grid=(grid_n,),
            in_specs=[
                pl.BlockSpec(memory_space=pltpu.MemorySpace.SMEM),      # bias
                pl.BlockSpec((18, L), lambda i: (0, 0)),                # weighted masks
                pl.BlockSpec((Nb, C, L), lambda i: (i, 0, 0)),          # x
            ],
            out_specs=pl.BlockSpec((Nb, C, L), lambda i: (i, 0, 0)),
        ),
        compiler_params=pltpu.CompilerParams(
            dimension_semantics=("parallel",),
            vmem_limit_bytes=vmem_limit),
    )(b_f, wm, x_flat)
    return out.reshape(N, C, H, W)


def spatial_gate_reference(x, conv_w, bn_gamma, bn_beta, bn_mean, bn_var,
                           eps=1e-5):
    """Plain-JAX reference (NCHW), mirrors the PyTorch module."""
    ch_max = jnp.max(x, axis=1, keepdims=True)
    ch_mean = jnp.mean(x, axis=1, keepdims=True)
    pooled = jnp.concatenate([ch_max, ch_mean], axis=1)                  # (N, 2, H, W)
    y = lax.conv_general_dilated(
        pooled, conv_w, window_strides=(1, 1), padding=((1, 1), (1, 1)),
        dimension_numbers=("NCHW", "OIHW", "NCHW"))                      # (N, 1, H, W)
    y = (y - bn_mean.reshape(1, -1, 1, 1)) / jnp.sqrt(
        bn_var.reshape(1, -1, 1, 1) + eps)
    y = y * bn_gamma.reshape(1, -1, 1, 1) + bn_beta.reshape(1, -1, 1, 1)
    scale = jax.nn.sigmoid(y)
    return x * scale


if __name__ == "__main__":
    key = jax.random.PRNGKey(0)
    k_x, k_w = jax.random.split(key)

    N, C, H, W = 2, 4, 16, 16
    x = jax.random.normal(k_x, (N, C, H, W), dtype=jnp.float32)

    # Deterministic parameter init (shapes from the module's __init__).
    conv_w = jax.random.normal(k_w, (1, 2, 3, 3), dtype=jnp.float32) * 0.2
    bn_gamma = jnp.array([0.9], dtype=jnp.float32)
    bn_beta = jnp.array([0.1], dtype=jnp.float32)
    bn_mean = jnp.array([0.05], dtype=jnp.float32)
    bn_var = jnp.array([1.2], dtype=jnp.float32)

    out = spatial_gate(x, conv_w, bn_gamma, bn_beta, bn_mean, bn_var)
    out = jax.block_until_ready(out)

    ref = spatial_gate_reference(x, conv_w, bn_gamma, bn_beta, bn_mean, bn_var)
    np.testing.assert_allclose(np.asarray(out), np.asarray(ref),
                               rtol=1e-5, atol=1e-5)
    print("KERNEL_OK")
</pallas_src>

<mosaic_0001>
module attributes {stable_mosaic.version = 11 : i64} {
  func.func @_spatial_gate_kernel(%arg0: i32, %arg1: memref<1xf32, #tpu.memory_space<smem>>, %arg2: memref<18x256xf32, #tpu.memory_space<vmem>>, %arg3: memref<1x4x256xf32, #tpu.memory_space<vmem>>, %arg4: memref<1x4x256xf32, #tpu.memory_space<vmem>>) attributes {dimension_semantics = [#tpu.dimension_semantics<parallel>], iteration_bounds = array<i64: 2>, scalar_prefetch = 0 : i64, scratch_operands = 0 : i64, tpu.core_type = #tpu.core_type<tc>, window_params = [{transform_indices = @transform_0, window_bounds = array<i64: 1>}, {pipeline_mode = #tpu.pipeline_mode<synchronous>, transform_indices = @transform_1, window_bounds = array<i64: 18, 256>}, {transform_indices = @transform_2, window_bounds = array<i64: 1, 4, 256>}, {transform_indices = @transform_3, window_bounds = array<i64: 1, 4, 256>}]} {
    %c0 = arith.constant 0 : index
    %c0_0 = arith.constant 0 : index
    %c0_1 = arith.constant 0 : index
    %0 = vector.load %arg3[%c0, %c0_0, %c0_1] : memref<1x4x256xf32, #tpu.memory_space<vmem>>, vector<1x4x256xf32>
    %cst = arith.constant dense<0xFF800000> : vector<1x256xf32>
    %1 = vector.multi_reduction <maximumf>, %0, %cst [1] : vector<1x4x256xf32> to vector<1x256xf32>
    %cst_2 = arith.constant dense<0.000000e+00> : vector<1x256xf32>
    %2 = vector.multi_reduction <add>, %0, %cst_2 [1] : vector<1x4x256xf32> to vector<1x256xf32>
    %cst_3 = arith.constant 2.500000e-01 : f32
    %3 = vector.broadcast %cst_3 : f32 to vector<1x256xf32>
    %4 = arith.mulf %2, %3 : vector<1x256xf32>
    %c0_4 = arith.constant 0 : index
    %c0_5 = arith.constant 0 : index
    %5 = vector.load %arg2[%c0_4, %c0_5] : memref<18x256xf32, #tpu.memory_space<vmem>>, vector<18x256xf32>
    %6 = vector.extract_strided_slice %5 {offsets = [4, 0], sizes = [1, 256], strides = [1, 1]} : vector<18x256xf32> to vector<1x256xf32>
    %7 = arith.mulf %6, %1 : vector<1x256xf32>
    %8 = vector.extract_strided_slice %5 {offsets = [13, 0], sizes = [1, 256], strides = [1, 1]} : vector<18x256xf32> to vector<1x256xf32>
    %9 = arith.mulf %8, %4 : vector<1x256xf32>
    %10 = arith.addf %7, %9 : vector<1x256xf32>
    %c17_i32 = arith.constant 17 : i32
    %11 = tpu.dynamic_rotate %1 by %c17_i32 dim 1 : vector<1x256xf32>, i32 -> vector<1x256xf32>
    %c17_i32_6 = arith.constant 17 : i32
    %12 = tpu.dynamic_rotate %4 by %c17_i32_6 dim 1 : vector<1x256xf32>, i32 -> vector<1x256xf32>
    %13 = vector.extract_strided_slice %5 {offsets = [0, 0], sizes = [1, 256], strides = [1, 1]} : vector<18x256xf32> to vector<1x256xf32>
    %14 = arith.mulf %13, %11 : vector<1x256xf32>
    %15 = arith.addf %10, %14 : vector<1x256xf32>
    %16 = vector.extract_strided_slice %5 {offsets = [9, 0], sizes = [1, 256], strides = [1, 1]} : vector<18x256xf32> to vector<1x256xf32>
    %17 = arith.mulf %16, %12 : vector<1x256xf32>
    %18 = arith.addf %15, %17 : vector<1x256xf32>
    %c16_i32 = arith.constant 16 : i32
    %19 = tpu.dynamic_rotate %1 by %c16_i32 dim 1 : vector<1x256xf32>, i32 -> vector<1x256xf32>
    %c16_i32_7 = arith.constant 16 : i32
    %20 = tpu.dynamic_rotate %4 by %c16_i32_7 dim 1 : vector<1x256xf32>, i32 -> vector<1x256xf32>
    %21 = vector.extract_strided_slice %5 {offsets = [1, 0], sizes = [1, 256], strides = [1, 1]} : vector<18x256xf32> to vector<1x256xf32>
    %22 = arith.mulf %21, %19 : vector<1x256xf32>
    %23 = arith.addf %18, %22 : vector<1x256xf32>
    %24 = vector.extract_strided_slice %5 {offsets = [10, 0], sizes = [1, 256], strides = [1, 1]} : vector<18x256xf32> to vector<1x256xf32>
    %25 = arith.mulf %24, %20 : vector<1x256xf32>
    %26 = arith.addf %23, %25 : vector<1x256xf32>
    %c15_i32 = arith.constant 15 : i32
    %27 = tpu.dynamic_rotate %1 by %c15_i32 dim 1 : vector<1x256xf32>, i32 -> vector<1x256xf32>
    %c15_i32_8 = arith.constant 15 : i32
    %28 = tpu.dynamic_rotate %4 by %c15_i32_8 dim 1 : vector<1x256xf32>, i32 -> vector<1x256xf32>
    %29 = vector.extract_strided_slice %5 {offsets = [2, 0], sizes = [1, 256], strides = [1, 1]} : vector<18x256xf32> to vector<1x256xf32>
    %30 = arith.mulf %29, %27 : vector<1x256xf32>
    %31 = arith.addf %26, %30 : vector<1x256xf32>
    %32 = vector.extract_strided_slice %5 {offsets = [11, 0], sizes = [1, 256], strides = [1, 1]} : vector<18x256xf32> to vector<1x256xf32>
    %33 = arith.mulf %32, %28 : vector<1x256xf32>
    %34 = arith.addf %31, %33 : vector<1x256xf32>
    %c1_i32 = arith.constant 1 : i32
    %35 = tpu.dynamic_rotate %1 by %c1_i32 dim 1 : vector<1x256xf32>, i32 -> vector<1x256xf32>
    %c1_i32_9 = arith.constant 1 : i32
    %36 = tpu.dynamic_rotate %4 by %c1_i32_9 dim 1 : vector<1x256xf32>, i32 -> vector<1x256xf32>
    %37 = vector.extract_strided_slice %5 {offsets = [3, 0], sizes = [1, 256], strides = [1, 1]} : vector<18x256xf32> to vector<1x256xf32>
    %38 = arith.mulf %37, %35 : vector<1x256xf32>
    %39 = arith.addf %34, %38 : vector<1x256xf32>
    %40 = vector.extract_strided_slice %5 {offsets = [12, 0], sizes = [1, 256], strides = [1, 1]} : vector<18x256xf32> to vector<1x256xf32>
    %41 = arith.mulf %40, %36 : vector<1x256xf32>
    %42 = arith.addf %39, %41 : vector<1x256xf32>
    %c255_i32 = arith.constant 255 : i32
    %43 = tpu.dynamic_rotate %1 by %c255_i32 dim 1 : vector<1x256xf32>, i32 -> vector<1x256xf32>
    %c255_i32_10 = arith.constant 255 : i32
    %44 = tpu.dynamic_rotate %4 by %c255_i32_10 dim 1 : vector<1x256xf32>, i32 -> vector<1x256xf32>
    %45 = vector.extract_strided_slice %5 {offsets = [5, 0], sizes = [1, 256], strides = [1, 1]} : vector<18x256xf32> to vector<1x256xf32>
    %46 = arith.mulf %45, %43 : vector<1x256xf32>
    %47 = arith.addf %42, %46 : vector<1x256xf32>
    %48 = vector.extract_strided_slice %5 {offsets = [14, 0], sizes = [1, 256], strides = [1, 1]} : vector<18x256xf32> to vector<1x256xf32>
    %49 = arith.mulf %48, %44 : vector<1x256xf32>
    %50 = arith.addf %47, %49 : vector<1x256xf32>
    %c241_i32 = arith.constant 241 : i32
    %51 = tpu.dynamic_rotate %1 by %c241_i32 dim 1 : vector<1x256xf32>, i32 -> vector<1x256xf32>
    %c241_i32_11 = arith.constant 241 : i32
    %52 = tpu.dynamic_rotate %4 by %c241_i32_11 dim 1 : vector<1x256xf32>, i32 -> vector<1x256xf32>
    %53 = vector.extract_strided_slice %5 {offsets = [6, 0], sizes = [1, 256], strides = [1, 1]} : vector<18x256xf32> to vector<1x256xf32>
    %54 = arith.mulf %53, %51 : vector<1x256xf32>
    %55 = arith.addf %50, %54 : vector<1x256xf32>
    %56 = vector.extract_strided_slice %5 {offsets = [15, 0], sizes = [1, 256], strides = [1, 1]} : vector<18x256xf32> to vector<1x256xf32>
    %57 = arith.mulf %56, %52 : vector<1x256xf32>
    %58 = arith.addf %55, %57 : vector<1x256xf32>
    %c240_i32 = arith.constant 240 : i32
    %59 = tpu.dynamic_rotate %1 by %c240_i32 dim 1 : vector<1x256xf32>, i32 -> vector<1x256xf32>
    %c240_i32_12 = arith.constant 240 : i32
    %60 = tpu.dynamic_rotate %4 by %c240_i32_12 dim 1 : vector<1x256xf32>, i32 -> vector<1x256xf32>
    %61 = vector.extract_strided_slice %5 {offsets = [7, 0], sizes = [1, 256], strides = [1, 1]} : vector<18x256xf32> to vector<1x256xf32>
    %62 = arith.mulf %61, %59 : vector<1x256xf32>
    %63 = arith.addf %58, %62 : vector<1x256xf32>
    %64 = vector.extract_strided_slice %5 {offsets = [16, 0], sizes = [1, 256], strides = [1, 1]} : vector<18x256xf32> to vector<1x256xf32>
    %65 = arith.mulf %64, %60 : vector<1x256xf32>
    %66 = arith.addf %63, %65 : vector<1x256xf32>
    %c239_i32 = arith.constant 239 : i32
    %67 = tpu.dynamic_rotate %1 by %c239_i32 dim 1 : vector<1x256xf32>, i32 -> vector<1x256xf32>
    %c239_i32_13 = arith.constant 239 : i32
    %68 = tpu.dynamic_rotate %4 by %c239_i32_13 dim 1 : vector<1x256xf32>, i32 -> vector<1x256xf32>
    %69 = vector.extract_strided_slice %5 {offsets = [8, 0], sizes = [1, 256], strides = [1, 1]} : vector<18x256xf32> to vector<1x256xf32>
    %70 = arith.mulf %69, %67 : vector<1x256xf32>
    %71 = arith.addf %66, %70 : vector<1x256xf32>
    %72 = vector.extract_strided_slice %5 {offsets = [17, 0], sizes = [1, 256], strides = [1, 1]} : vector<18x256xf32> to vector<1x256xf32>
    %73 = arith.mulf %72, %68 : vector<1x256xf32>
    %74 = arith.addf %71, %73 : vector<1x256xf32>
    %c0_14 = arith.constant 0 : index
    %75 = memref.load %arg1[%c0_14] : memref<1xf32, #tpu.memory_space<smem>>
    %76 = vector.broadcast %75 : f32 to vector<1x256xf32>
    %77 = arith.addf %74, %76 : vector<1x256xf32>
    %78 = arith.negf %77 : vector<1x256xf32>
    %79 = math.exp %78 : vector<1x256xf32>
    %cst_15 = arith.constant 1.000000e+00 : f32
    %80 = vector.broadcast %cst_15 : f32 to vector<1x256xf32>
    %81 = arith.addf %80, %79 : vector<1x256xf32>
    %82 = arith.divf %80, %81 : vector<1x256xf32>
    %83 = vector.shape_cast %82 : vector<1x256xf32> to vector<1x1x256xf32>
    %84 = vector.broadcast %83 : vector<1x1x256xf32> to vector<1x4x256xf32>
    %85 = arith.mulf %0, %84 : vector<1x4x256xf32>
    %c0_16 = arith.constant 0 : index
    %c0_17 = arith.constant 0 : index
    %c0_18 = arith.constant 0 : index
    %86 = vector.load %arg4[%c0_16, %c0_17, %c0_18] : memref<1x4x256xf32, #tpu.memory_space<vmem>>, vector<1x4x256xf32>
    tpu.vector_store %arg4[%c0_16, %c0_17, %c0_18], %85 {strides = array<i32>} : memref<1x4x256xf32, #tpu.memory_space<vmem>>, vector<1x4x256xf32>,
    return
  }
  func.func @transform_0(%arg0: i32) -> i32 {
    %c0_i32 = arith.constant 0 : i32
    %c0_i32_0 = arith.constant 0 : i32
    return %c0_i32 : i32
  }
  func.func @transform_1(%arg0: i32) -> (i32, i32) {
    %c0_i32 = arith.constant 0 : i32
    %c0_i32_0 = arith.constant 0 : i32
    %c0_i32_1 = arith.constant 0 : i32
    return %c0_i32, %c0_i32_0 : i32, i32
  }
  func.func @transform_2(%arg0: i32) -> (i32, i32, i32) {
    %c0_i32 = arith.constant 0 : i32
    %c0_i32_0 = arith.constant 0 : i32
    %c0_i32_1 = arith.constant 0 : i32
    return %arg0, %c0_i32, %c0_i32_0 : i32, i32, i32
  }
  func.func @transform_3(%arg0: i32) -> (i32, i32, i32) {
    %c0_i32 = arith.constant 0 : i32
    %c0_i32_0 = arith.constant 0 : i32
    %c0_i32_1 = arith.constant 0 : i32
    return %arg0, %c0_i32, %c0_i32_0 : i32, i32, i32
  }
}

</mosaic_0001>

<llo_original>
// kernel: tpu_custom_call.1
$region0: #{tpu_custom_call.1}
  #allocation0 [shape = 'u32[]', space=smem, size = 0x4, offset = 0x4, fixed_abs, tag = 'smem constant byte address 0x4 - core index']
  #allocation1 [shape = 'u32[144,128]{1,0:T(1,128)}', space=vmem, size = 0x12000, scoped, tag = 'internal scratch']
  #allocation2 [shape = 'f32[1]{0:T(128)S(6)}', space=smem, size = 0x200, scoped, tag = 'scoped memory for tpu_custom_call.1']
  %s0 = inlined_call_operand.<no memory space> [shape: f32[1], index: 0, kind: input, shape index: {}]
  %s1 = inlined_call_operand.hbm [shape: f32[18,256], index: 1, kind: input, shape index: {}]
  %s2 = inlined_call_operand.hbm [shape: f32[2,4,256], index: 2, kind: input, shape index: {}]
  %s3 = inlined_call_operand.hbm [shape: f32[2,4,256], index: 3, kind: output, shape index: {}]
  %s4 = sld [smem:[#allocation0]]
  $region53: #{tpu_custom_call.1} parent=0
    _
  %s6 = ssub.s32 1, %s4
  %s7 = scalar_select 0, %s6, %s4
  %8 = sst [smem:[#allocation2]] %s0
  $region1: #{tpu_custom_call.1} parent=0
    #allocation3 [shape = 'u8[24576]{0}', space=vmem, size = 0x6000, scoped, tag = 'input window, operand 1, single buffered']
    #allocation4 [shape = 's32[2]{0}', space=sflag, size = 0x8, scoped, tag = 'scoped memory for tpu_custom_call.1']
    #allocation5 [shape = 's32[2]{0}', space=sflag, size = 0x8, scoped, tag = 'scoped memory for tpu_custom_call.1']
    #allocation6 [shape = 'u8[8192]{0}', space=vmem, size = 0x2000, scoped, tag = 'input window, operand 2']
    #allocation7 [shape = 's32[2]{0}', space=sflag, size = 0x8, scoped, tag = 'scoped memory for tpu_custom_call.1']
    #allocation8 [shape = 'u8[8192]{0}', space=vmem, size = 0x2000, scoped, tag = 'output window, operand 0']
    %9 = vsyncpa [#allocation4], 0
    %10 = vsyncpa [#allocation7], 0
    %s11 = scalar_lea.sflag [#allocation7], 1
    %12 = vsyncpa %s11, 0
    %13 = vsyncpa [#allocation5], 0
    %s14 = scalar_lea.sflag [#allocation5], 1
    %15 = vsyncpa %s14, 0
    loop: start=0, step=1, limit=4
    $region2: #{tpu_custom_call.1} parent=1 // loop_pre_header
      _
    $region3: #{tpu_custom_call.1} parent=1 // loop_header
      %s17 = sphi 0, %s21
      %p18 = scmp.ge.s32.totalorder %s17, 4
      %s25 = sphi 0, %s25
      %s27 = sphi 0, %s25
      %s28 = sphi 0, %s27
      %s42 = sphi 0, %s28
      %s46 = sphi 0, %s46
      %s48 = sphi 0, %s46
      %s49 = sphi 0, %s48
      %s63 = sphi 0, %s49
      %s69 = sphi 0, %s71
      %s72 = sphi 0, %s69
      %s73 = sphi 0, %s72
      %s89 = sphi 0, %s73
      %s95 = sphi 0, %s97
      %s98 = sphi 0, %s95
      %s99 = sphi 0, %s98
      %s115 = sphi 0, %s99
    $region4: #{tpu_custom_call.1} parent=1 // loop_header_branch
      %20 = sbr.rel (%p18) target = $region8
    $region5: #{tpu_custom_call.1} parent=1 // loop_body
      %s22 = ssub.s32 %s17, 1
      %s23 = ssub.s32 %s17, 2
      %s24 = sadd.s32 %s17, 1
      %s26 = sadd.s32 %s25, 1
      %p29 = scmp.eq.s32.totalorder %s17, 1
      %p30 = scmp.ne.s32.totalorder %s25, %s27
      %p31 = scmp.eq.s32.totalorder %s17, 0
      %p32 = por %p30, %p31
      %p33 = scmp.ne.s32.totalorder %s25, %s27
      %p34 = scmp.eq.s32.totalorder %s22, 1
      %p35 = por %p33, %p34
      %p36 = scmp.ne.s32.totalorder %s27, %s28
      %p37 = scmp.eq.s32.totalorder %s22, 0
      %p38 = por %p36, %p37
      %p39 = scmp.ne.s32.totalorder %s27, %s28
      %p40 = scmp.eq.s32.totalorder %s23, 1
      %p41 = por %p39, %p40
      %p43 = scmp.ne.s32.totalorder %s28, %s42
      %p44 = scmp.eq.s32.totalorder %s23, 0
      %p45 = por %p43, %p44
      %s47 = sadd.s32 %s46, 1
      %p50 = scmp.eq.s32.totalorder %s17, 1
      %p51 = scmp.ne.s32.totalorder %s46, %s48
      %p52 = scmp.eq.s32.totalorder %s17, 0
      %p53 = por %p51, %p52
      %p54 = scmp.ne.s32.totalorder %s46, %s48
      %p55 = scmp.eq.s32.totalorder %s22, 1
      %p56 = por %p54, %p55
      %p57 = scmp.ne.s32.totalorder %s48, %s49
      %p58 = scmp.eq.s32.totalorder %s22, 0
      %p59 = por %p57, %p58
      %p60 = scmp.ne.s32.totalorder %s48, %s49
      %p61 = scmp.eq.s32.totalorder %s23, 1
      %p62 = por %p60, %p61
      %p64 = scmp.ne.s32.totalorder %s49, %s63
      %p65 = scmp.eq.s32.totalorder %s23, 0
      %p66 = por %p64, %p65
      %s67 = ssub.s32 %s17, %s24
      %p68 = scmp.eq.s32.totalorder %s67, 0
      %s70 = sadd.s32 %s69, 1
      %s71 = scalar_select %p68, %s69, %s70
      %p74 = pneg %p68
      %p75 = scmp.eq.s32.totalorder %s17, 1
      %p76 = por %p74, %p75
      %p77 = scmp.ne.s32.totalorder %s69, %s72
      %p78 = scmp.eq.s32.totalorder %s17, 0
      %p79 = por %p77, %p78
      %p80 = scmp.ne.s32.totalorder %s69, %s72
      %p81 = scmp.eq.s32.totalorder %s22, 1
      %p82 = por %p80, %p81
      %p83 = scmp.ne.s32.totalorder %s72, %s73
      %p84 = scmp.eq.s32.totalorder %s22, 0
      %p85 = por %p83, %p84
      %p86 = scmp.ne.s32.totalorder %s72, %s73
      %p87 = scmp.eq.s32.totalorder %s23, 1
      %p88 = por %p86, %p87
      %p90 = scmp.ne.s32.totalorder %s73, %s89
      %p91 = scmp.eq.s32.totalorder %s23, 0
      %p92 = por %p90, %p91
      %s93 = ssub.s32 %s17, %s24
      %p94 = scmp.eq.s32.totalorder %s93, 0
      %s96 = sadd.s32 %s95, 1
      %s97 = scalar_select %p94, %s95, %s96
      %p100 = pneg %p94
      %p101 = scmp.eq.s32.totalorder %s17, 1
      %p102 = por %p100, %p101
      %p103 = scmp.ne.s32.totalorder %s95, %s98
      %p104 = scmp.eq.s32.totalorder %s17, 0
      %p105 = por %p103, %p104
      %p106 = scmp.ne.s32.totalorder %s95, %s98
      %p107 = scmp.eq.s32.totalorder %s22, 1
      %p108 = por %p106, %p107
      %p109 = scmp.ne.s32.totalorder %s98, %s99
      %p110 = scmp.eq.s32.totalorder %s22, 0
      %p111 = por %p109, %p110
      %p112 = scmp.ne.s32.totalorder %s98, %s99
      %p113 = scmp.eq.s32.totalorder %s23, 1
      %p114 = por %p112, %p113
      %p116 = scmp.ne.s32.totalorder %s99, %s115
      %p117 = scmp.eq.s32.totalorder %s23, 0
      %p118 = por %p116, %p117
      %p119 = scmp.le.s32.totalorder 1, %s17
      %p120 = scmp.lt.s32.totalorder %s17, 3
      %p121 = pnand %p119, %p120
      %p122 = pneg %p121
      // Predicated region
      $region9: #{tpu_custom_call.1} parent=5 // pred_check
        _
      $region10: #{tpu_custom_call.1} parent=5 // pred_check_branch
        %124 = sbr.rel (%p121) target = $region12
      $region11: #{tpu_custom_call.1} parent=5 // pred_region
        %s125 = ssub.s32 %s17, 1
        // Predicated region
        $region13: #{tpu_custom_call.1} parent=11 // pred_check
          %p126 = pneg %p38
        $region14: #{tpu_custom_call.1} parent=11 // pred_check_branch
          %128 = sbr.rel (%p126) target = $region16
        $region15: #{tpu_custom_call.1} parent=11 // pred_region
          _
        $region16: #{tpu_custom_call.1} parent=11 // pred_fallthru
          _
        // Predicated region
        $region17: #{tpu_custom_call.1} parent=11 // pred_check
          %p129 = pneg %p59
        $region18: #{tpu_custom_call.1} parent=11 // pred_check_branch
          %131 = sbr.rel (%p129) target = $region20
        $region19: #{tpu_custom_call.1} parent=11 // pred_region
          %s133 = ssub.s32 768, 768
          %134 = vsyncadd [#allocation4], %s133
          %s135 = sshll.u32 [#allocation3], 4
          %s136 = int_to_ptr.vmem [resolvable:$true] %s135
          %141 = dma.hbm_to_vmem [thread:$0]  %s1, 768, %s136, [#allocation4], 256, 256, 16
        $region20: #{tpu_custom_call.1} parent=11 // pred_fallthru
          _
      $region12: #{tpu_custom_call.1} parent=5 // pred_fallthru
        _
      %p142 = scmp.lt.s32.totalorder %s17, 2
      // Predicated region
      $region21: #{tpu_custom_call.1} parent=5 // pred_check
        %p143 = pneg %p142
      $region22: #{tpu_custom_call.1} parent=5 // pred_check_branch
        %145 = sbr.rel (%p143) target = $region24
      $region23: #{tpu_custom_call.1} parent=5 // pred_region
        // Predicated region
        $region25: #{tpu_custom_call.1} parent=23 // pred_check
          %p146 = pneg %p79
        $region26: #{tpu_custom_call.1} parent=23 // pred_check_branch
          %148 = sbr.rel (%p146) target = $region28
        $region27: #{tpu_custom_call.1} parent=23 // pred_region
          %s149 = sand.u32 %s69, 1
          %s150 = scalar_lea.sflag [#allocation7], %s149
          %s151 = sand.u32 %s69, 1
          %s152 = smul.addr %s151, 8
          %s153 = scalar_lea.vmem [#allocation6], %s152
          %s155 = ssub.s32 128, 128
          %156 = vsyncadd %s150, %s155
          %s157 = smul.addr %s17, 2
          %s158 = smul.addr %s157, 64
          %s159 = scalar_lea.hbm %s2, %s158
          %s161 = sshll.u32 %s153, 4
          %s162 = int_to_ptr.vmem [resolvable:$true] %s161
          %164 = dma.hbm_to_vmem [thread:$0]  %s159, 128, %s162, %s150
        $region28: #{tpu_custom_call.1} parent=23 // pred_fallthru
          _
      $region24: #{tpu_custom_call.1} parent=5 // pred_fallthru
        _
      %p165 = scmp.le.s32.totalorder 1, %s17
      %p166 = scmp.lt.s32.totalorder %s17, 3
      %p167 = pnand %p165, %p166
      %p168 = pneg %p167
      // Predicated region
      $region29: #{tpu_custom_call.1} parent=5 // pred_check
        _
      $region30: #{tpu_custom_call.1} parent=5 // pred_check_branch
        %170 = sbr.rel (%p167) target = $region32
      $region31: #{tpu_custom_call.1} parent=5 // pred_region
        %s171 = ssub.s32 %s17, 1
        // Predicated region
        $region33: #{tpu_custom_call.1} parent=31 // pred_check
          %p172 = pneg %p59
        $region34: #{tpu_custom_call.1} parent=31 // pred_check_branch
          %174 = sbr.rel (%p172) target = $region36
        $region35: #{tpu_custom_call.1} parent=31 // pred_region
          %175 = dma.done [#allocation4], 768
        $region36: #{tpu_custom_call.1} parent=31 // pred_fallthru
          _
        %s176 = sand.u32 %s72, 1
        %s177 = scalar_lea.sflag [#allocation7], %s176
        %s178 = sand.u32 %s72, 1
        %s179 = smul.addr %s178, 8
        %s180 = scalar_lea.vmem [#allocation6], %s179
        // Predicated region
        $region37: #{tpu_custom_call.1} parent=31 // pred_check
          %p181 = pneg %p85
        $region38: #{tpu_custom_call.1} parent=31 // pred_check_branch
          %183 = sbr.rel (%p181) target = $region40
        $region39: #{tpu_custom_call.1} parent=31 // pred_region
          %184 = dma.done %s177, 128
        $region40: #{tpu_custom_call.1} parent=31 // pred_fallthru
          _
        %p185 = pneg %p38
        %p186 = pneg %p35
        %p187 = pneg %p59
        %p188 = pneg %p56
        %s189 = sand.u32 %s72, 1
        %s190 = scalar_lea.sflag [#allocation7], %s189
        %s191 = sand.u32 %s72, 1
        %s192 = smul.addr %s191, 8
        %s193 = scalar_lea.vmem [#allocation6], %s192
        %p194 = pneg %p85
        %p195 = pneg %p82
        %p196 = pneg %p111
        %p197 = pneg %p108
        %s198 = sand.u32 %s98, 1
        %s199 = scalar_lea.sflag [#allocation5], %s198
        %s200 = sand.u32 %s98, 1
        %s201 = smul.addr %s200, 8
        %s202 = scalar_lea.vmem [#allocation8], %s201
        %v203 = vld [vmem:[%s180] sm:$0xff]
        %v205 = vcombine.high %v203, %v203
        %vm207 = vcmask 1043456
        %v208 = vsel %vm207, %v203, -inf
        %v209 = vrot.slane %v208, 4
        %v210 = vmax.f32 %v208, %v209
        %v211 = vrot.slane %v210, 2
        %v212 = vmax.f32 %v210, %v211
        %v213 = vrot.slane %v212, 1
        %v214 = vmax.f32 %v212, %v213
        %v215 = vsel %vm207, %v205, -inf
        %v216 = vrot.slane %v215, 4
        %v217 = vmax.f32 %v215, %v216
        %v218 = vrot.slane %v217, 2
        %v219 = vmax.f32 %v217, %v218
        %v220 = vrot.slane %v219, 1
        %v221 = vmax.f32 %v219, %v220
        %v222 = vsel %vm207, %v203, 0.0
        %v223 = vrot.slane %v222, 4
        %v224 = vadd.f32 %v222, %v223
        %v225 = vrot.slane %v224, 2
        %v226 = vadd.f32 %v224, %v225
        %v227 = vrot.slane %v226, 1
        %v228 = vadd.f32 %v226, %v227
        %v229 = vsel %vm207, %v205, 0.0
        %v230 = vrot.slane %v229, 4
        %v231 = vadd.f32 %v229, %v230
        %v232 = vrot.slane %v231, 2
        %v233 = vadd.f32 %v231, %v232
        %v234 = vrot.slane %v233, 1
        %v235 = vadd.f32 %v233, %v234
        %v236 = vmul.f32 %v228, 0.25
        %v237 = vmul.f32 %v235, 0.25
        %v238 = vld [vmem:[#allocation3] sm:$0xff]
        %v239 = vld [vmem:[#allocation3 + $0x8] sm:$0xff]
        %v240 = vld [vmem:[#allocation3 + $0x10] sm:$0xff]
        %v241 = vld [vmem:[#allocation3 + $0x18] sm:$0xff]
        %v242 = vld [vmem:[#allocation3 + $0x20] sm:$0x3]
        %v243 = vld [vmem:[#allocation3 + $0x28] sm:$0x3]
        %v244 = vmul.f32 %v238, %v214
        %v245 = vmul.f32 %v239, %v221
        %v246 = vmul.f32 %v240, %v236
        %v247 = vmul.f32 %v241, %v237
        %v250 = vrot.slane %v246, 1
        %v251 = vrot.slane %v247, 1
        %v254 = vadd.f32 %v244, %v250
        %v255 = vadd.f32 %v245, %v251
        %256 = vrot.lane.b32.xlu0 %v214, 17
        %v257 = vpop.permute.xlu0 %256
        %258 = vrot.lane.b32.xlu0 %v221, 17
        %v259 = vpop.permute.xlu0 %258
        %v260 = vlaneseq
        %v261 = vand.u32 %v260, 127
        %vm262 = vcmp.lt.s32.totalorder %v261, 17
        %v263 = vsel %vm262, %v257, %v259
        %v264 = vsel %vm262, %v259, %v257
        %265 = vrot.lane.b32.xlu0 %v236, 17
        %v266 = vpop.permute.xlu0 %265
        %267 = vrot.lane.b32.xlu0 %v237, 17
        %v268 = vpop.permute.xlu0 %267
        %v269 = vsel %vm262, %v266, %v268
        %v270 = vsel %vm262, %v268, %v266
        %v271 = vmul.f32 %v238, %v264
        %v272 = vmul.f32 %v239, %v263
        %v275 = vrot.slane %v271, 4
        %v276 = vrot.slane %v272, 4
        %v279 = vadd.f32 %v254, %v275
        %v280 = vadd.f32 %v255, %v276
        %v283 = vrot.slane %v270, 7
        %v284 = vrot.slane %v269, 7
        %v287 = vmul.f32 %v240, %v283
        %v288 = vmul.f32 %v241, %v284
        %v291 = vrot.slane %v287, 5
        %v292 = vrot.slane %v288, 5
        %v295 = vadd.f32 %v279, %v291
        %v296 = vadd.f32 %v280, %v292
        %297 = vrot.lane.b32.xlu0 %v214, 16
        %v298 = vpop.permute.xlu0 %297
        %299 = vrot.lane.b32.xlu0 %v221, 16
        %v300 = vpop.permute.xlu0 %299
        %vm301 = vcmp.lt.s32.totalorder %v261, 16
        %v302 = vsel %vm301, %v298, %v300
        %v303 = vsel %vm301, %v300, %v298
        %304 = vrot.lane.b32.xlu0 %v236, 16
        %v305 = vpop.permute.xlu0 %304
        %306 = vrot.lane.b32.xlu0 %v237, 16
        %v307 = vpop.permute.xlu0 %306
        %v308 = vsel %vm301, %v305, %v307
        %v309 = vsel %vm301, %v307, %v305
        %v312 = vrot.slane %v303, 7
        %v313 = vrot.slane %v302, 7
        %v316 = vmul.f32 %v238, %v312
        %v317 = vmul.f32 %v239, %v313
        %v320 = vrot.slane %v316, 5
        %v321 = vrot.slane %v317, 5
        %v324 = vadd.f32 %v295, %v320
        %v325 = vadd.f32 %v296, %v321
        %v328 = vrot.slane %v309, 6
        %v329 = vrot.slane %v308, 6
        %v332 = vmul.f32 %v240, %v328
        %v333 = vmul.f32 %v241, %v329
        %v336 = vrot.slane %v332, 6
        %v337 = vrot.slane %v333, 6
        %v340 = vadd.f32 %v324, %v336
        %v341 = vadd.f32 %v325, %v337
        %342 = vrot.lane.b32.xlu0 %v214, 15
        %v343 = vpop.permute.xlu0 %342
        %344 = vrot.lane.b32.xlu0 %v221, 15
        %v345 = vpop.permute.xlu0 %344
        %vm346 = vcmp.lt.s32.totalorder %v261, 15
        %v347 = vsel %vm346, %v343, %v345
        %v348 = vsel %vm346, %v345, %v343
        %349 = vrot.lane.b32.xlu0 %v236, 15
        %v350 = vpop.permute.xlu0 %349
        %351 = vrot.lane.b32.xlu0 %v237, 15
        %v352 = vpop.permute.xlu0 %351
        %v353 = vsel %vm346, %v350, %v352
        %v354 = vsel %vm346, %v352, %v350
        %v357 = vrot.slane %v348, 6
        %v358 = vrot.slane %v347, 6
        %v361 = vmul.f32 %v238, %v357
        %v362 = vmul.f32 %v239, %v358
        %v365 = vrot.slane %v361, 6
        %v366 = vrot.slane %v362, 6
        %v369 = vadd.f32 %v340, %v365
        %v370 = vadd.f32 %v341, %v366
        %v373 = vrot.slane %v354, 5
        %v374 = vrot.slane %v353, 5
        %v377 = vmul.f32 %v240, %v373
        %v378 = vmul.f32 %v241, %v374
        %v381 = vrot.slane %v377, 7
        %v382 = vrot.slane %v378, 7
        %v385 = vadd.f32 %v369, %v381
        %v386 = vadd.f32 %v370, %v382
        %387 = vrot.lane.b32.xlu0 %v214, 1
        %v388 = vpop.permute.xlu0 %387
        %389 = vrot.lane.b32.xlu0 %v221, 1
        %v390 = vpop.permute.xlu0 %389
        %vm391 = vcmp.lt.s32.totalorder %v261, 1
        %v392 = vsel %vm391, %v388, %v390
        %v393 = vsel %vm391, %v390, %v388
        %394 = vrot.lane.b32.xlu0 %v236, 1
        %v395 = vpop.permute.xlu0 %394
        %396 = vrot.lane.b32.xlu0 %v237, 1
        %v397 = vpop.permute.xlu0 %396
        %v398 = vsel %vm391, %v395, %v397
        %v399 = vsel %vm391, %v397, %v395
        %v402 = vrot.slane %v393, 5
        %v403 = vrot.slane %v392, 5
        %v406 = vmul.f32 %v238, %v402
        %v407 = vmul.f32 %v239, %v403
        %v410 = vrot.slane %v406, 7
        %v411 = vrot.slane %v407, 7
        %v414 = vadd.f32 %v385, %v410
        %v415 = vadd.f32 %v386, %v411
        %v418 = vrot.slane %v399, 4
        %v419 = vrot.slane %v398, 4
        %v422 = vmul.f32 %v240, %v418
        %v423 = vmul.f32 %v241, %v419
        %v424 = vadd.f32 %v414, %v422
        %v425 = vadd.f32 %v415, %v423
        %426 = vrot.lane.b32.xlu0 %v214, 127
        %v427 = vpop.permute.xlu0 %426
        %428 = vrot.lane.b32.xlu0 %v221, 127
        %v429 = vpop.permute.xlu0 %428
        %vm430 = vcmp.lt.s32.totalorder %v261, 127
        %v431 = vsel %vm430, %v427, %v429
        %v432 = vsel %vm430, %v429, %v427
        %433 = vrot.lane.b32.xlu0 %v236, 127
        %v434 = vpop.permute.xlu0 %433
        %435 = vrot.lane.b32.xlu0 %v237, 127
        %v436 = vpop.permute.xlu0 %435
        %v437 = vsel %vm430, %v434, %v436
        %v438 = vsel %vm430, %v436, %v434
        %v441 = vrot.slane %v431, 3
        %v442 = vrot.slane %v432, 3
        %v445 = vmul.f32 %v238, %v441
        %v446 = vmul.f32 %v239, %v442
        %v449 = vrot.slane %v445, 1
        %v450 = vrot.slane %v446, 1
        %v453 = vadd.f32 %v424, %v449
        %v454 = vadd.f32 %v425, %v450
        %v457 = vrot.slane %v437, 2
        %v458 = vrot.slane %v438, 2
        %v461 = vmul.f32 %v240, %v457
        %v462 = vmul.f32 %v241, %v458
        %v465 = vrot.slane %v461, 2
        %v466 = vrot.slane %v462, 2
        %v469 = vadd.f32 %v453, %v465
        %v470 = vadd.f32 %v454, %v466
        %471 = vrot.lane.b32.xlu0 %v214, 113
        %v472 = vpop.permute.xlu0 %471
        %473 = vrot.lane.b32.xlu0 %v221, 113
        %v474 = vpop.permute.xlu0 %473
        %vm475 = vcmp.lt.s32.totalorder %v261, 113
        %v476 = vsel %vm475, %v472, %v474
        %v477 = vsel %vm475, %v474, %v472
        %478 = vrot.lane.b32.xlu0 %v236, 113
        %v479 = vpop.permute.xlu0 %478
        %480 = vrot.lane.b32.xlu0 %v237, 113
        %v481 = vpop.permute.xlu0 %480
        %v482 = vsel %vm475, %v479, %v481
        %v483 = vsel %vm475, %v481, %v479
        %v486 = vrot.slane %v476, 2
        %v487 = vrot.slane %v477, 2
        %v490 = vmul.f32 %v238, %v486
        %v491 = vmul.f32 %v239, %v487
        %v494 = vrot.slane %v490, 2
        %v495 = vrot.slane %v491, 2
        %v498 = vadd.f32 %v469, %v494
        %v499 = vadd.f32 %v470, %v495
        %v502 = vrot.slane %v482, 1
        %v503 = vrot.slane %v483, 1
        %v506 = vmul.f32 %v240, %v502
        %v507 = vmul.f32 %v241, %v503
        %v510 = vrot.slane %v506, 3
        %v511 = vrot.slane %v507, 3
        %v514 = vadd.f32 %v498, %v510
        %v515 = vadd.f32 %v499, %v511
        %516 = vrot.lane.b32.xlu0 %v214, 112
        %v517 = vpop.permute.xlu0 %516
        %518 = vrot.lane.b32.xlu0 %v221, 112
        %v519 = vpop.permute.xlu0 %518
        %vm520 = vcmp.lt.s32.totalorder %v261, 112
        %v521 = vsel %vm520, %v517, %v519
        %v522 = vsel %vm520, %v519, %v517
        %523 = vrot.lane.b32.xlu0 %v236, 112
        %v524 = vpop.permute.xlu0 %523
        %525 = vrot.lane.b32.xlu0 %v237, 112
        %v526 = vpop.permute.xlu0 %525
        %v527 = vsel %vm520, %v524, %v526
        %v528 = vsel %vm520, %v526, %v524
        %v531 = vrot.slane %v521, 1
        %v532 = vrot.slane %v522, 1
        %v535 = vmul.f32 %v238, %v531
        %v536 = vmul.f32 %v239, %v532
        %v539 = vrot.slane %v535, 3
        %v540 = vrot.slane %v536, 3
        %v543 = vadd.f32 %v514, %v539
        %v544 = vadd.f32 %v515, %v540
        %v545 = vmul.f32 %v242, %v527
        %v546 = vmul.f32 %v243, %v528
        %v549 = vrot.slane %v545, 4
        %v550 = vrot.slane %v546, 4
        %v553 = vadd.f32 %v543, %v549
        %v554 = vadd.f32 %v544, %v550
        %555 = vrot.lane.b32.xlu0 %v214, 111
        %v556 = vpop.permute.xlu0 %555
        %557 = vrot.lane.b32.xlu0 %v221, 111
        %v558 = vpop.permute.xlu0 %557
        %vm559 = vcmp.lt.s32.totalorder %v261, 111
        %v560 = vsel %vm559, %v556, %v558
        %v561 = vsel %vm559, %v558, %v556
        %562 = vrot.lane.b32.xlu0 %v236, 111
        %v563 = vpop.permute.xlu0 %562
        %564 = vrot.lane.b32.xlu0 %v237, 111
        %v565 = vpop.permute.xlu0 %564
        %v566 = vsel %vm559, %v563, %v565
        %v567 = vsel %vm559, %v565, %v563
        %v568 = vmul.f32 %v240, %v560
        %v569 = vmul.f32 %v241, %v561
        %v572 = vrot.slane %v568, 4
        %v573 = vrot.slane %v569, 4
        %v576 = vadd.f32 %v553, %v572
        %v577 = vadd.f32 %v554, %v573
        %v580 = vrot.slane %v566, 7
        %v581 = vrot.slane %v567, 7
        %v584 = vmul.f32 %v242, %v580
        %v585 = vmul.f32 %v243, %v581
        %v588 = vrot.slane %v584, 5
        %v589 = vrot.slane %v585, 5
        %v592 = vadd.f32 %v576, %v588
        %v593 = vadd.f32 %v577, %v589
        %s594 = sld [smem:[#allocation2]]
        %v595 = vstv %s594
        %v596 = vadd.f32 %v592, %v595
        %v597 = vadd.f32 %v593, %v595
        %v598 = vxor.u32 %v596, 2147483648
        %v599 = vxor.u32 %v597, 2147483648
        %v600 = vmul.f32 %v598, 1.442695
        %v601 = vpow.pop %v600
        %v602 = vmul.f32 %v599, 1.442695
        %v603 = vpow.pop %v602
        %v604 = vadd.f32 %v601, 1.0
        %v605 = vadd.f32 %v603, 1.0
        %v606 = vrcp.pop %v604
        %v607 = vmul.f32 1.0, %v606
        %v608 = vrcp.pop %v605
        %v609 = vmul.f32 1.0, %v608
        %v610 = vlaneseq
        %v611 = vshrl.u32 %v610, 7
        %v612 = vsub.s32 4, %v611
        %v613 = vrot.slane %v607, %v612
        %v614 = vlaneseq
        %v615 = vshrl.u32 %v614, 7
        %v616 = vsub.s32 4, %v615
        %v617 = vrot.slane %v609, %v616
        %v620 = vcombine.low %v613, %v617
        %v622 = vmul.f32 %v203, %v620
        %623 = vst [vmem:[%s202] sm:$0xff] %v622
        %s624 = sand.u32 %s98, 1
        %s625 = scalar_lea.sflag [#allocation5], %s624
        %s626 = sand.u32 %s98, 1
        %s627 = smul.addr %s626, 8
        %s628 = scalar_lea.vmem [#allocation8], %s627
        // Predicated region
        $region41: #{tpu_custom_call.1} parent=31 // pred_check
          %p629 = pneg %p108
        $region42: #{tpu_custom_call.1} parent=31 // pred_check_branch
          %631 = sbr.rel (%p629) target = $region44
        $region43: #{tpu_custom_call.1} parent=31 // pred_region
          %s633 = ssub.s32 128, 128
          %634 = vsyncadd %s625, %s633
          %s635 = smul.addr %s22, 2
          %s636 = smul.addr %s635, 64
          %s637 = scalar_lea.hbm %s3, %s636
          %s639 = sshll.u32 %s628, 4
          %s640 = int_to_ptr.vmem [resolvable:$true] %s639
          %642 = dma.vmem_to_hbm [thread:$0]  %s640, 128, %s637, %s625
        $region44: #{tpu_custom_call.1} parent=31 // pred_fallthru
          _
      $region32: #{tpu_custom_call.1} parent=5 // pred_fallthru
        _
      %p643 = scmp.le.s32.totalorder 2, %s17
      // Predicated region
      $region45: #{tpu_custom_call.1} parent=5 // pred_check
        %p644 = pneg %p643
      $region46: #{tpu_custom_call.1} parent=5 // pred_check_branch
        %646 = sbr.rel (%p644) target = $region48
      $region47: #{tpu_custom_call.1} parent=5 // pred_region
        %s647 = ssub.s32 %s17, 2
        // Predicated region
        $region49: #{tpu_custom_call.1} parent=47 // pred_check
          %p648 = pneg %p114
        $region50: #{tpu_custom_call.1} parent=47 // pred_check_branch
          %650 = sbr.rel (%p648) target = $region52
        $region51: #{tpu_custom_call.1} parent=47 // pred_region
          %s651 = sand.u32 %s99, 1
          %s652 = scalar_lea.sflag [#allocation5], %s651
          %s653 = sand.u32 %s99, 1
          %s654 = smul.addr %s653, 8
          %s655 = scalar_lea.vmem [#allocation8], %s654
          %656 = dma.done %s652, 128
        $region52: #{tpu_custom_call.1} parent=47 // pred_fallthru
          _
      $region48: #{tpu_custom_call.1} parent=5 // pred_fallthru
        _
    $region6: #{tpu_custom_call.1} parent=1 // loop_footer
      %s21 = sadd.s32 1, %s17
    $region7: #{tpu_custom_call.1} parent=1 // loop_footer_branch
      %16 = sbr.rel target = $region3
    $region8: #{tpu_custom_call.1} parent=1 // loop_exit
      _
    %657 = vsyncpa [#allocation4], 1
    %s658 = scalar_lea.sflag [#allocation4], 1
    %659 = vsyncpa %s658, 1
    %660 = vsyncpa [#allocation7], 1
    %s661 = scalar_lea.sflag [#allocation7], 1
    %662 = vsyncpa %s661, 1
    %663 = vsyncpa [#allocation5], 1
    %s664 = scalar_lea.sflag [#allocation5], 1
    %665 = vsyncpa %s664, 1

</llo_original>
